<compile_context>
chip_gen: v6e
topology: v6e:2x2x1
jax: 0.10.0
libtpu: 0.0.40
codegen_flags: <defaults>
</compile_context>

<pallas_src>
import functools

import jax
import jax.numpy as jnp
from jax.experimental import pallas as pl
from jax.experimental.pallas import tpu as pltpu


# ----------------------------------------------------------------------------
# Kernel: one grid step == one chunk of Tc LSTM steps + GMM head.
# ----------------------------------------------------------------------------
def _mdnrnn_kernel(
    gx_ref,       # (Tc, tb, 4H)  precomputed x@W_ih^T + b_ih + b_hh, streamed
    w_hh_ref,     # (H, 4H)       W_hh^T, resident
    w_gmm_ref,    # (H, GP)       gmm weight^T, zero-padded to GP lanes, resident
    b_gmm_ref,    # (1, GP)       gmm bias, zero-padded, resident
    h0_ref,       # (tb, H)       initial hidden (this batch tile)
    c0_ref,       # (tb, H)       initial cell
    # outputs
    h_out_ref,    # (tb, H)       final hidden
    c_out_ref,    # (tb, H)       final cell
    gmm_out_ref,  # (Tc, tb, GP)  per-step GMM slab (lane-dense, 128 wide)
    # scratch
    h_scr,        # (tb, H)  VMEM, carried across chunks
    c_scr,        # (tb, H)  VMEM, carried across chunks
    *,
    hidden,          # H      (static)
    chunk_len,       # Tc     (static)
    total_steps,     # T      (static, unpadded)
    stride,          # G * L  (static)
    num_gauss,       # G      (static)
    needs_tail_mask, # bool   (static): Tp != T -> mask padded tail steps
    unroll,          # int    (static)
):
    chunk = pl.program_id(1)
    H = hidden

    @pl.when(chunk == 0)
    def _():
        h_scr[...] = h0_ref[...]
        c_scr[...] = c0_ref[...]

    h_init = h_scr[...]
    c_init = c_scr[...]

    # Resident operands read once per chunk.
    w_hh = w_hh_ref[...]
    w_gmm = w_gmm_ref[...]
    b_gmm = b_gmm_ref[...]

    # Lane masks for the GMM head: computed once per CHUNK (amortized over Tc
    # steps), not once per step.
    tb = gmm_out_ref.shape[1]
    GP = gmm_out_ref.shape[2]
    lane = jax.lax.broadcasted_iota(jnp.int32, (tb, GP), 1)
    sig_mask = (lane >= stride) & (lane < 2 * stride)
    pi_mask = (lane >= 2 * stride) & (lane < 2 * stride + num_gauss)
    pi_neg = jnp.where(pi_mask, 0.0, -1e30).astype(jnp.float32)

    def step(j, carry):
        h, c = carry

        # ---- LSTM recurrence (critical path): gates_x[t] + h @ W_hh^T ------
        gates = gx_ref[j] + jnp.dot(h, w_hh, preferred_element_type=jnp.float32)

        sig = jax.nn.sigmoid(gates)              # one full-width EUP pass
        i_g = sig[:, 0 * H:1 * H]
        f_g = sig[:, 1 * H:2 * H]
        o_g = sig[:, 3 * H:4 * H]
        g_g = jnp.tanh(gates[:, 2 * H:3 * H])    # tanh only on the g slice

        c_new = f_g * c + i_g * g_g
        h_new = o_g * jnp.tanh(c_new)

        # ---- GMM head (off the recurrence; overlaps next step's matmul) ----
        out_full = jnp.dot(h_new, w_gmm, preferred_element_type=jnp.float32) + b_gmm
        pi_masked = out_full + pi_neg            # padded / non-pi lanes -> -1e30
        m = jnp.max(pi_masked, axis=-1, keepdims=True)
        lse = m + jnp.log(jnp.sum(jnp.exp(pi_masked - m), axis=-1, keepdims=True))
        # NOTE: exp is evaluated over all 128 lanes (incl. mu/r/d lanes) before
        # the select; this is benign — jnp.where never propagates the discarded
        # branch on TPU.  Do not "optimize" this into exp of masked lanes only.
        slab = jnp.where(sig_mask, jnp.exp(out_full), out_full)   # sigmas = exp
        slab = jnp.where(pi_mask, out_full - lse, slab)           # logpi = log_softmax
        gmm_out_ref[j] = slab

        if needs_tail_mask:
            # Padded tail steps (T not divisible by Tc): freeze the carry so
            # the final h/c correspond to step T-1.
            valid = (chunk * chunk_len + j) < total_steps
            h_new = jnp.where(valid, h_new, h)
            c_new = jnp.where(valid, c_new, c)
        return (h_new, c_new)

    h_fin, c_fin = jax.lax.fori_loop(0, chunk_len, step, (h_init, c_init),
                                     unroll=unroll)

    h_scr[...] = h_fin
    c_scr[...] = c_fin
    # Refresh the resident final-state output every chunk (cheap VMEM store;
    # only one HBM writeback happens when the block index finally changes).
    h_out_ref[...] = h_fin
    c_out_ref[...] = c_fin


# ----------------------------------------------------------------------------
# One-time parameter preprocessing (hoisted out of the jitted rollout).
# ----------------------------------------------------------------------------
def prepare_params(params, *, hidden_size):
    H = hidden_size
    w_ih_t = params["w_ih"].T.astype(jnp.float32)                  # (A+L, 4H)
    w_hh_t = params["w_hh"].T.astype(jnp.float32)                  # (H, 4H)
    b_lstm = (params["b_ih"] + params["b_hh"]).astype(jnp.float32) # (4H,)

    gout = params["w_gmm"].shape[0]                                # (2L+1)G + 2
    gp = max(128, ((gout + 127) // 128) * 128)                     # pad to lane width
    w_gmm_p = jnp.zeros((H, gp), jnp.float32).at[:, :gout].set(
        params["w_gmm"].T.astype(jnp.float32))
    b_gmm_p = jnp.zeros((1, gp), jnp.float32).at[:, :gout].set(
        params["b_gmm"].astype(jnp.float32))

    return {"w_ih_t": w_ih_t, "w_hh_t": w_hh_t, "b_lstm": b_lstm,
            "w_gmm_p": w_gmm_p, "b_gmm_p": b_gmm_p}


# ----------------------------------------------------------------------------
# Rollout: T timesteps inside ONE pallas_call (T=1 == MDNRNNCell.forward).
# ----------------------------------------------------------------------------
@functools.partial(jax.jit, static_argnames=("latent_size", "gaussian_size",
                                             "chunk_len", "batch_tile"))
def mdnrnn_rollout(actions, latents, h0, c0, prep, *, latent_size, gaussian_size,
                   chunk_len=None, batch_tile=None):
    """actions:(T,B,A) latents:(T,B,L) h0/c0:(B,H) -> per-step MDN outputs + final (h,c)."""
    T, B, A = actions.shape
    L = latent_size
    H = h0.shape[1]
    G = gaussian_size
    stride = G * L
    GP = prep["w_gmm_p"].shape[1]

    # --- batch padding / tiling (batch_tile > 1 tile => v7x 2-TC sharding) ---
    Bp = ((B + 7) // 8) * 8
    tb = Bp if batch_tile is None else batch_tile
    tb = max(8, (tb // 8) * 8)
    if Bp % tb != 0:
        tb = Bp
    nb = Bp // tb

    # --- time chunking: amortize per-grid-step overhead over Tc steps --------
    # Per-step VMEM cost ~ (4H + GP)*tb*4 B (x2 double-buffer); Tc<=256 stays
    # well inside the 32 MiB scoped default on all generations.
    Tc = min(T, 256) if chunk_len is None else max(1, min(chunk_len, T))
    nchunks = -(-T // Tc)
    Tp = nchunks * Tc
    unroll = min(4, Tc)

    # --- hoisted input projection: one big parallel matmul over all T*B ------
    x = jnp.concatenate([actions, latents], axis=2).astype(jnp.float32)   # (T,B,A+L)
    gates_x = jnp.einsum("tbi,ij->tbj", x, prep["w_ih_t"]) + prep["b_lstm"]  # (T,B,4H)

    gates_x = jnp.pad(gates_x, ((0, Tp - T), (0, Bp - B), (0, 0)))
    h0p = jnp.pad(h0.astype(jnp.float32), ((0, Bp - B), (0, 0)))
    c0p = jnp.pad(c0.astype(jnp.float32), ((0, Bp - B), (0, 0)))

    kernel = functools.partial(
        _mdnrnn_kernel,
        hidden=H, chunk_len=Tc, total_steps=T, stride=stride, num_gauss=G,
        needs_tail_mask=(Tp != T), unroll=unroll)

    h_f, c_f, gmm = pl.pallas_call(
        kernel,
        out_shape=(
            jax.ShapeDtypeStruct((Bp, H), jnp.float32),        # final h
            jax.ShapeDtypeStruct((Bp, H), jnp.float32),        # final c
            jax.ShapeDtypeStruct((Tp, Bp, GP), jnp.float32),   # per-step GMM slab
        ),
        grid_spec=pltpu.PrefetchScalarGridSpec(
            num_scalar_prefetch=0,
            grid=(nb, nchunks),
            in_specs=[
                pl.BlockSpec((Tc, tb, 4 * H), lambda b, c: (c, b, 0)),  # gates_x chunk
                pl.BlockSpec((H, 4 * H), lambda b, c: (0, 0)),          # W_hh^T resident
                pl.BlockSpec((H, GP), lambda b, c: (0, 0)),             # GMM W resident
                pl.BlockSpec((1, GP), lambda b, c: (0, 0)),             # GMM bias resident
                pl.BlockSpec((tb, H), lambda b, c: (b, 0)),             # h0
                pl.BlockSpec((tb, H), lambda b, c: (b, 0)),             # c0
            ],
            out_specs=[
                pl.BlockSpec((tb, H), lambda b, c: (b, 0)),             # final h
                pl.BlockSpec((tb, H), lambda b, c: (b, 0)),             # final c
                pl.BlockSpec((Tc, tb, GP), lambda b, c: (c, b, 0)),     # GMM chunk
            ],
            scratch_shapes=[
                pltpu.VMEM((tb, H), jnp.float32),                       # h carry
                pltpu.VMEM((tb, H), jnp.float32),                       # c carry
            ],
        ),
        compiler_params=pltpu.CompilerParams(
            # batch tiles may be split across TensorCores (v7x); the time-chunk
            # axis carries the recurrence and must stay sequential.
            dimension_semantics=("parallel", "arbitrary"),
        ),
    )(gates_x, prep["w_hh_t"], prep["w_gmm_p"], prep["b_gmm_p"], h0p, c0p)

    # Slice padded time steps / batch rows / GMM lanes off in the wrapper.
    g = gmm[:T, :B, :]                                           # (T, B, GP)
    mus = g[..., :stride].reshape(T, B, G, L)
    sigmas = g[..., stride:2 * stride].reshape(T, B, G, L)
    logpi = g[..., 2 * stride:2 * stride + G]
    r = g[..., 2 * stride + G]
    d = g[..., 2 * stride + G + 1]
    return mus, sigmas, logpi, r, d, (h_f[:B], c_f[:B])


def mdnrnn_cell_forward(action, latent, h, c, prep, *, latent_size, gaussian_size):
    """Single-step MDNRNNCell.forward == T=1 rollout."""
    mus, sigmas, logpi, r, d, hidden = mdnrnn_rollout(
        action[None], latent[None], h, c, prep,
        latent_size=latent_size, gaussian_size=gaussian_size)
    return mus[0], sigmas[0], logpi[0], r[0], d[0], hidden


# ----------------------------------------------------------------------------
# Parameters + pure-JAX reference (for correctness checks).
# ----------------------------------------------------------------------------
def init_params(key, *, latent_size, action_size, hidden_size, gaussian_size):
    """Deterministic synthetic parameters with PyTorch-equivalent shapes."""
    L, A, H, G = latent_size, action_size, hidden_size, gaussian_size
    gout = (2 * L + 1) * G + 2
    ks = jax.random.split(key, 6)
    scale = 0.1
    return {
        # nn.LSTMCell(L+A, H): weight_ih (4H, L+A), weight_hh (4H, H), biases (4H,)
        "w_ih": scale * jax.random.normal(ks[0], (4 * H, L + A), jnp.float32),
        "w_hh": scale * jax.random.normal(ks[1], (4 * H, H), jnp.float32),
        "b_ih": scale * jax.random.normal(ks[2], (4 * H,), jnp.float32),
        "b_hh": scale * jax.random.normal(ks[3], (4 * H,), jnp.float32),
        # nn.Linear(H, (2L+1)G+2): weight (Gout, H), bias (Gout,)
        "w_gmm": scale * jax.random.normal(ks[4], (gout, H), jnp.float32),
        "b_gmm": scale * jax.random.normal(ks[5], (gout,), jnp.float32),
    }


def _reference_cell(params, action, latent, h, c, *, latent_size, gaussian_size):
    hp = jax.lax.Precision.HIGHEST
    x = jnp.concatenate([action, latent], axis=1)
    gates = (jnp.dot(x, params["w_ih"].T, precision=hp) + params["b_ih"]
             + jnp.dot(h, params["w_hh"].T, precision=hp) + params["b_hh"])
    H = h.shape[1]
    i = jax.nn.sigmoid(gates[:, 0 * H:1 * H])
    f = jax.nn.sigmoid(gates[:, 1 * H:2 * H])
    g = jnp.tanh(gates[:, 2 * H:3 * H])
    o = jax.nn.sigmoid(gates[:, 3 * H:4 * H])
    c1 = f * c + i * g
    h1 = o * jnp.tanh(c1)
    out = jnp.dot(h1, params["w_gmm"].T, precision=hp) + params["b_gmm"]
    stride = gaussian_size * latent_size
    mus = out[:, :stride].reshape(-1, gaussian_size, latent_size)
    sigmas = jnp.exp(out[:, stride:2 * stride]).reshape(-1, gaussian_size, latent_size)
    logpi = jax.nn.log_softmax(out[:, 2 * stride:2 * stride + gaussian_size], axis=-1)
    r = out[:, -2]
    d = out[:, -1]
    return mus, sigmas, logpi, r, d, (h1, c1)


def _chk(a, b, name, atol=1e-2, rtol=2e-2):
    assert a.shape == b.shape, f"{name}: shape {a.shape} vs {b.shape}"
    assert bool(jnp.allclose(a, b, atol=atol, rtol=rtol)), (
        f"{name}: max abs err {float(jnp.max(jnp.abs(a - b)))}")


# ----------------------------------------------------------------------------
if __name__ == "__main__":
    B, L, A, H, G = 4, 8, 4, 32, 5
    T = 6

    key = jax.random.PRNGKey(0)
    ks = jax.random.split(key, 7)

    params = init_params(ks[0], latent_size=L, action_size=A,
                         hidden_size=H, gaussian_size=G)
    prep = prepare_params(params, hidden_size=H)      # hoisted: done once

    action = jax.random.normal(ks[1], (B, A), jnp.float32)
    latent = jax.random.normal(ks[2], (B, L), jnp.float32)
    h0 = jax.random.normal(ks[3], (B, H), jnp.float32)
    c0 = jax.random.normal(ks[4], (B, H), jnp.float32)

    # --- single-step MDNRNNCell.forward (T = 1) ------------------------------
    mus, sigmas, logpi, r, d, (h1, c1) = mdnrnn_cell_forward(
        action, latent, h0, c0, prep, latent_size=L, gaussian_size=G)
    jax.block_until_ready((mus, sigmas, logpi, r, d, h1, c1))

    rmus, rsig, rlogpi, rr, rd, (rh1, rc1) = _reference_cell(
        params, action, latent, h0, c0, latent_size=L, gaussian_size=G)

    assert mus.shape == (B, G, L) and sigmas.shape == (B, G, L)
    assert logpi.shape == (B, G) and r.shape == (B,) and d.shape == (B,)
    assert h1.shape == (B, H) and c1.shape == (B, H)
    assert bool(jnp.all(sigmas > 0))
    assert bool(jnp.allclose(jnp.sum(jnp.exp(logpi), axis=-1), 1.0, atol=1e-4))
    _chk(mus, rmus, "mus")
    _chk(sigmas, rsig, "sigmas")
    _chk(logpi, rlogpi, "logpi")
    _chk(r, rr, "r")
    _chk(d, rd, "d")
    _chk(h1, rh1, "h1")
    _chk(c1, rc1, "c1")

    # --- multi-step rollout: whole recurrence inside ONE pallas_call ---------
    actions_seq = jax.random.normal(ks[5], (T, B, A), jnp.float32)
    latents_seq = jax.random.normal(ks[6], (T, B, L), jnp.float32)

    mus_s, sig_s, logpi_s, r_s, d_s, (hT, cT) = mdnrnn_rollout(
        actions_seq, latents_seq, h0, c0, prep, latent_size=L, gaussian_size=G)
    jax.block_until_ready((mus_s, sig_s, logpi_s, r_s, d_s, hT, cT))

    h_ref, c_ref = h0, c0
    for t in range(T):
        m_t, s_t, lp_t, r_t, d_t, (h_ref, c_ref) = _reference_cell(
            params, actions_seq[t], latents_seq[t], h_ref, c_ref,
            latent_size=L, gaussian_size=G)
        _chk(mus_s[t], m_t, f"mus[{t}]")
        _chk(sig_s[t], s_t, f"sigmas[{t}]")
        _chk(logpi_s[t], lp_t, f"logpi[{t}]")
        _chk(r_s[t], r_t, f"r[{t}]")
        _chk(d_s[t], d_t, f"d[{t}]")
    _chk(hT, h_ref, "h_final")
    _chk(cT, c_ref, "c_final")

    # --- exercise the time-chunked (non-divisible) path: Tc=4 over T=6 -------
    mus_c, sig_c, logpi_c, r_c, d_c, (hTc, cTc) = mdnrnn_rollout(
        actions_seq, latents_seq, h0, c0, prep,
        latent_size=L, gaussian_size=G, chunk_len=4)
    jax.block_until_ready((mus_c, hTc, cTc))
    _chk(mus_c, mus_s, "mus_chunked")
    _chk(logpi_c, logpi_s, "logpi_chunked")
    _chk(hTc, hT, "h_final_chunked")
    _chk(cTc, cT, "c_final_chunked")

    print("KERNEL_OK")
</pallas_src>

<mosaic_0001>
module attributes {stable_mosaic.version = 11 : i64} {
  func.func @_mdnrnn_kernel(%arg0: i32, %arg1: i32, %arg2: memref<1x8x128xf32, #tpu.memory_space<vmem>>, %arg3: memref<32x128xf32, #tpu.memory_space<vmem>>, %arg4: memref<32x128xf32, #tpu.memory_space<vmem>>, %arg5: memref<1x128xf32, #tpu.memory_space<vmem>>, %arg6: memref<8x32xf32, #tpu.memory_space<vmem>>, %arg7: memref<8x32xf32, #tpu.memory_space<vmem>>, %arg8: memref<8x32xf32, #tpu.memory_space<vmem>>, %arg9: memref<8x32xf32, #tpu.memory_space<vmem>>, %arg10: memref<1x8x128xf32, #tpu.memory_space<vmem>>, %arg11: memref<8x32xf32, #tpu.memory_space<vmem>>, %arg12: memref<8x32xf32, #tpu.memory_space<vmem>>) attributes {dimension_semantics = [#tpu.dimension_semantics<parallel>, #tpu.dimension_semantics<arbitrary>], iteration_bounds = array<i64: 1, 1>, scalar_prefetch = 0 : i64, scratch_operands = 2 : i64, tpu.core_type = #tpu.core_type<tc>, window_params = [{transform_indices = @transform_0, window_bounds = array<i64: 1, 8, 128>}, {pipeline_mode = #tpu.pipeline_mode<synchronous>, transform_indices = @transform_1, window_bounds = array<i64: 32, 128>}, {pipeline_mode = #tpu.pipeline_mode<synchronous>, transform_indices = @transform_2, window_bounds = array<i64: 32, 128>}, {pipeline_mode = #tpu.pipeline_mode<synchronous>, transform_indices = @transform_3, window_bounds = array<i64: 1, 128>}, {transform_indices = @transform_4, window_bounds = array<i64: 8, 32>}, {transform_indices = @transform_5, window_bounds = array<i64: 8, 32>}, {transform_indices = @transform_6, window_bounds = array<i64: 8, 32>}, {transform_indices = @transform_7, window_bounds = array<i64: 8, 32>}, {transform_indices = @transform_8, window_bounds = array<i64: 1, 8, 128>}]} {
    %c0_i32 = arith.constant 0 : i32
    %0 = arith.cmpi eq, %arg1, %c0_i32 : i32
    %1 = arith.extui %0 : i1 to i32
    %c0_i32_0 = arith.constant 0 : i32
    %2 = arith.cmpi ne, %1, %c0_i32_0 : i32
    scf.if %2 {
      %c0_30 = arith.constant 0 : index
      %c0_31 = arith.constant 0 : index
      %68 = vector.load %arg6[%c0_30, %c0_31] : memref<8x32xf32, #tpu.memory_space<vmem>>, vector<8x32xf32>
      %c0_32 = arith.constant 0 : index
      %c0_33 = arith.constant 0 : index
      %69 = vector.load %arg11[%c0_32, %c0_33] : memref<8x32xf32, #tpu.memory_space<vmem>>, vector<8x32xf32>
      tpu.vector_store %arg11[%c0_32, %c0_33], %68 {strides = array<i32>} : memref<8x32xf32, #tpu.memory_space<vmem>>, vector<8x32xf32>,
      %c0_34 = arith.constant 0 : index
      %c0_35 = arith.constant 0 : index
      %70 = vector.load %arg7[%c0_34, %c0_35] : memref<8x32xf32, #tpu.memory_space<vmem>>, vector<8x32xf32>
      %c0_36 = arith.constant 0 : index
      %c0_37 = arith.constant 0 : index
      %71 = vector.load %arg12[%c0_36, %c0_37] : memref<8x32xf32, #tpu.memory_space<vmem>>, vector<8x32xf32>
      tpu.vector_store %arg12[%c0_36, %c0_37], %70 {strides = array<i32>} : memref<8x32xf32, #tpu.memory_space<vmem>>, vector<8x32xf32>,
    } else {
    }
    %c0 = arith.constant 0 : index
    %c0_1 = arith.constant 0 : index
    %3 = vector.load %arg11[%c0, %c0_1] : memref<8x32xf32, #tpu.memory_space<vmem>>, vector<8x32xf32>
    %c0_2 = arith.constant 0 : index
    %c0_3 = arith.constant 0 : index
    %4 = vector.load %arg12[%c0_2, %c0_3] : memref<8x32xf32, #tpu.memory_space<vmem>>, vector<8x32xf32>
    %c0_4 = arith.constant 0 : index
    %c0_5 = arith.constant 0 : index
    %5 = vector.load %arg3[%c0_4, %c0_5] : memref<32x128xf32, #tpu.memory_space<vmem>>, vector<32x128xf32>
    %c0_6 = arith.constant 0 : index
    %c0_7 = arith.constant 0 : index
    %6 = vector.load %arg4[%c0_6, %c0_7] : memref<32x128xf32, #tpu.memory_space<vmem>>, vector<32x128xf32>
    %c0_8 = arith.constant 0 : index
    %c0_9 = arith.constant 0 : index
    %7 = vector.load %arg5[%c0_8, %c0_9] : memref<1x128xf32, #tpu.memory_space<vmem>>, vector<1x128xf32>
    %8 = tpu.iota {dimensions = array<i32: 1>} : vector<8x128xi32>
    %c40_i32 = arith.constant 40 : i32
    %9 = vector.broadcast %c40_i32 : i32 to vector<8x128xi32>
    %10 = arith.cmpi sge, %8, %9 : vector<8x128xi32>
    %c80_i32 = arith.constant 80 : i32
    %11 = vector.broadcast %c80_i32 : i32 to vector<8x128xi32>
    %12 = arith.cmpi slt, %8, %11 : vector<8x128xi32>
    %13 = arith.andi %10, %12 : vector<8x128xi1>
    %c80_i32_10 = arith.constant 80 : i32
    %14 = vector.broadcast %c80_i32_10 : i32 to vector<8x128xi32>
    %15 = arith.cmpi sge, %8, %14 : vector<8x128xi32>
    %c85_i32 = arith.constant 85 : i32
    %16 = vector.broadcast %c85_i32 : i32 to vector<8x128xi32>
    %17 = arith.cmpi slt, %8, %16 : vector<8x128xi32>
    %18 = arith.andi %15, %17 : vector<8x128xi1>
    %cst = arith.constant 0.000000e+00 : f32
    %cst_11 = arith.constant -1.000000e+30 : f32
    %19 = vector.broadcast %cst : f32 to vector<8x128xf32>
    %20 = vector.broadcast %cst_11 : f32 to vector<8x128xf32>
    %21 = arith.select %18, %19, %20 : vector<8x128xi1>, vector<8x128xf32>
    %c0_i32_12 = arith.constant 0 : i32
    %22 = arith.index_cast %c0_i32_12 : i32 to index
    %c0_13 = arith.constant 0 : index
    %c0_14 = arith.constant 0 : index
    %23 = vector.load %arg2[%22, %c0_13, %c0_14] : memref<1x8x128xf32, #tpu.memory_space<vmem>>, vector<1x8x128xf32>
    %24 = vector.shape_cast %23 : vector<1x8x128xf32> to vector<8x128xf32>
    %cst_15 = arith.constant dense<0.000000e+00> : vector<8x128xf32>
    %25 = tpu.matmul %3, %5, %cst_15 {dimension_numbers = #tpu.dot_dimension_numbers<[1], [0], [0], [1], [0, 0, 1, 1], [], []>} : vector<8x32xf32>, vector<32x128xf32>, vector<8x128xf32> -> vector<8x128xf32>
    %26 = arith.addf %24, %25 : vector<8x128xf32>
    %27 = arith.negf %26 : vector<8x128xf32>
    %28 = math.exp %27 : vector<8x128xf32>
    %cst_16 = arith.constant 1.000000e+00 : f32
    %29 = vector.broadcast %cst_16 : f32 to vector<8x128xf32>
    %30 = arith.addf %29, %28 : vector<8x128xf32>
    %31 = arith.divf %29, %30 : vector<8x128xf32>
    %32 = vector.extract_strided_slice %31 {offsets = [0, 0], sizes = [8, 32], strides = [1, 1]} : vector<8x128xf32> to vector<8x32xf32>
    %33 = vector.extract_strided_slice %31 {offsets = [0, 32], sizes = [8, 32], strides = [1, 1]} : vector<8x128xf32> to vector<8x32xf32>
    %34 = vector.extract_strided_slice %31 {offsets = [0, 96], sizes = [8, 32], strides = [1, 1]} : vector<8x128xf32> to vector<8x32xf32>
    %35 = vector.extract_strided_slice %26 {offsets = [0, 64], sizes = [8, 32], strides = [1, 1]} : vector<8x128xf32> to vector<8x32xf32>
    %36 = math.tanh %35 : vector<8x32xf32>
    %37 = arith.mulf %33, %4 : vector<8x32xf32>
    %38 = arith.mulf %32, %36 : vector<8x32xf32>
    %39 = arith.addf %37, %38 : vector<8x32xf32>
    %40 = math.tanh %39 : vector<8x32xf32>
    %41 = arith.mulf %34, %40 : vector<8x32xf32>
    %cst_17 = arith.constant dense<0.000000e+00> : vector<8x128xf32>
    %42 = tpu.matmul %41, %6, %cst_17 {dimension_numbers = #tpu.dot_dimension_numbers<[1], [0], [0], [1], [0, 0, 1, 1], [], []>} : vector<8x32xf32>, vector<32x128xf32>, vector<8x128xf32> -> vector<8x128xf32>
    %43 = vector.broadcast %7 : vector<1x128xf32> to vector<8x128xf32>
    %44 = arith.addf %42, %43 : vector<8x128xf32>
    %45 = arith.addf %44, %21 : vector<8x128xf32>
    %cst_18 = arith.constant dense<0xFF800000> : vector<8xf32>
    %46 = vector.multi_reduction <maximumf>, %45, %cst_18 [1] : vector<8x128xf32> to vector<8xf32>
    %47 = vector.shape_cast %46 : vector<8xf32> to vector<8x1xf32>
    %48 = vector.broadcast %47 : vector<8x1xf32> to vector<8x128xf32>
    %49 = arith.subf %45, %48 : vector<8x128xf32>
    %50 = math.exp %49 : vector<8x128xf32>
    %cst_19 = arith.constant dense<0.000000e+00> : vector<8xf32>
    %51 = vector.multi_reduction <add>, %50, %cst_19 [1] : vector<8x128xf32> to vector<8xf32>
    %52 = vector.shape_cast %51 : vector<8xf32> to vector<8x1xf32>
    %53 = math.log %52 : vector<8x1xf32>
    %54 = arith.addf %47, %53 : vector<8x1xf32>
    %55 = math.exp %44 : vector<8x128xf32>
    %56 = arith.select %13, %55, %44 : vector<8x128xi1>, vector<8x128xf32>
    %57 = vector.broadcast %54 : vector<8x1xf32> to vector<8x128xf32>
    %58 = arith.subf %44, %57 : vector<8x128xf32>
    %59 = arith.select %18, %58, %56 : vector<8x128xi1>, vector<8x128xf32>
    %60 = arith.index_cast %c0_i32_12 : i32 to index
    %c0_20 = arith.constant 0 : index
    %c0_21 = arith.constant 0 : index
    %61 = vector.load %arg10[%60, %c0_20, %c0_21] : memref<1x8x128xf32, #tpu.memory_space<vmem>>, vector<1x8x128xf32>
    %62 = vector.shape_cast %61 : vector<1x8x128xf32> to vector<8x128xf32>
    %63 = vector.shape_cast %59 : vector<8x128xf32> to vector<1x8x128xf32>
    tpu.vector_store %arg10[%60, %c0_20, %c0_21], %63 {strides = array<i32>} : memref<1x8x128xf32, #tpu.memory_space<vmem>>, vector<1x8x128xf32>,
    %c1_i32 = arith.constant 1 : i32
    %c0_22 = arith.constant 0 : index
    %c0_23 = arith.constant 0 : index
    %64 = vector.load %arg11[%c0_22, %c0_23] : memref<8x32xf32, #tpu.memory_space<vmem>>, vector<8x32xf32>
    tpu.vector_store %arg11[%c0_22, %c0_23], %41 {strides = array<i32>} : memref<8x32xf32, #tpu.memory_space<vmem>>, vector<8x32xf32>,
    %c0_24 = arith.constant 0 : index
    %c0_25 = arith.constant 0 : index
    %65 = vector.load %arg12[%c0_24, %c0_25] : memref<8x32xf32, #tpu.memory_space<vmem>>, vector<8x32xf32>
    tpu.vector_store %arg12[%c0_24, %c0_25], %39 {strides = array<i32>} : memref<8x32xf32, #tpu.memory_space<vmem>>, vector<8x32xf32>,
    %c0_26 = arith.constant 0 : index
    %c0_27 = arith.constant 0 : index
    %66 = vector.load %arg8[%c0_26, %c0_27] : memref<8x32xf32, #tpu.memory_space<vmem>>, vector<8x32xf32>
    tpu.vector_store %arg8[%c0_26, %c0_27], %41 {strides = array<i32>} : memref<8x32xf32, #tpu.memory_space<vmem>>, vector<8x32xf32>,
    %c0_28 = arith.constant 0 : index
    %c0_29 = arith.constant 0 : index
    %67 = vector.load %arg9[%c0_28, %c0_29] : memref<8x32xf32, #tpu.memory_space<vmem>>, vector<8x32xf32>
    tpu.vector_store %arg9[%c0_28, %c0_29], %39 {strides = array<i32>} : memref<8x32xf32, #tpu.memory_space<vmem>>, vector<8x32xf32>,
    return
  }
  func.func @transform_0(%arg0: i32, %arg1: i32) -> (i32, i32, i32) {
    %c0_i32 = arith.constant 0 : i32
    %c0_i32_0 = arith.constant 0 : i32
    return %arg1, %arg0, %c0_i32 : i32, i32, i32
  }
  func.func @transform_1(%arg0: i32, %arg1: i32) -> (i32, i32) {
    %c0_i32 = arith.constant 0 : i32
    %c0_i32_0 = arith.constant 0 : i32
    %c0_i32_1 = arith.constant 0 : i32
    return %c0_i32, %c0_i32_0 : i32, i32
  }
  func.func @transform_2(%arg0: i32, %arg1: i32) -> (i32, i32) {
    %c0_i32 = arith.constant 0 : i32
    %c0_i32_0 = arith.constant 0 : i32
    %c0_i32_1 = arith.constant 0 : i32
    return %c0_i32, %c0_i32_0 : i32, i32
  }
  func.func @transform_3(%arg0: i32, %arg1: i32) -> (i32, i32) {
    %c0_i32 = arith.constant 0 : i32
    %c0_i32_0 = arith.constant 0 : i32
    %c0_i32_1 = arith.constant 0 : i32
    return %c0_i32, %c0_i32_0 : i32, i32
  }
  func.func @transform_4(%arg0: i32, %arg1: i32) -> (i32, i32) {
    %c0_i32 = arith.constant 0 : i32
    %c0_i32_0 = arith.constant 0 : i32
    return %arg0, %c0_i32 : i32, i32
  }
  func.func @transform_5(%arg0: i32, %arg1: i32) -> (i32, i32) {
    %c0_i32 = arith.constant 0 : i32
    %c0_i32_0 = arith.constant 0 : i32
    return %arg0, %c0_i32 : i32, i32
  }
  func.func @transform_6(%arg0: i32, %arg1: i32) -> (i32, i32) {
    %c0_i32 = arith.constant 0 : i32
    %c0_i32_0 = arith.constant 0 : i32
    return %arg0, %c0_i32 : i32, i32
  }
  func.func @transform_7(%arg0: i32, %arg1: i32) -> (i32, i32) {
    %c0_i32 = arith.constant 0 : i32
    %c0_i32_0 = arith.constant 0 : i32
    return %arg0, %c0_i32 : i32, i32
  }
  func.func @transform_8(%arg0: i32, %arg1: i32) -> (i32, i32, i32) {
    %c0_i32 = arith.constant 0 : i32
    %c0_i32_0 = arith.constant 0 : i32
    return %arg1, %arg0, %c0_i32 : i32, i32, i32
  }
}

</mosaic_0001>

<llo_original>
// kernel: mdnrnn_rollout.1
$region0: #{mdnrnn_rollout.1}
  #allocation0 [shape = 'u32[]', space=smem, size = 0x4, offset = 0x4, fixed_abs, tag = 'smem constant byte address 0x4 - core index']
  #allocation1 [shape = 'u32[144,128]{1,0:T(1,128)}', space=vmem, size = 0x12000, scoped, tag = 'internal scratch']
  #allocation2 [shape = 'f32[8,32]{1,0:T(8,128)}', space=vmem, size = 0x1000, scoped, tag = 'scratch operand']
  #allocation3 [shape = 'f32[8,32]{1,0:T(8,128)}', space=vmem, size = 0x1000, scoped, tag = 'scratch operand']
  %s0 = inlined_call_operand.vmem [shape: f32[1,8,128], index: 0, kind: input, shape index: {}]
  %s1 = inlined_call_operand.vmem [shape: f32[32,128], index: 1, kind: input, shape index: {}]
  %s2 = inlined_call_operand.vmem [shape: f32[32,128], index: 2, kind: input, shape index: {}]
  %s3 = inlined_call_operand.vmem [shape: f32[1,128], index: 3, kind: input, shape index: {}]
  %s4 = inlined_call_operand.vmem [shape: f32[8,32], index: 4, kind: input, shape index: {}]
  %s5 = inlined_call_operand.vmem [shape: f32[8,32], index: 5, kind: input, shape index: {}]
  %s6 = inlined_call_operand.vmem [shape: f32[8,32], index: 6, kind: output, shape index: {0}]
  %s7 = inlined_call_operand.vmem [shape: f32[8,32], index: 7, kind: output, shape index: {1}]
  %s8 = inlined_call_operand.vmem [shape: f32[1,8,128], index: 8, kind: output, shape index: {2}]
  %9 = xla_tuple %s6, %s7, %s8
  %s10 = sld [smem:[#allocation0]]
  $region54: #{mdnrnn_rollout.1} parent=0
    _
  %s12 = ssub.s32 1, %s10
  %s13 = scalar_select 0, %s12, %s10
  // Predicated region
  $region2: #{mdnrnn_rollout.1} parent=0 // pred_check
    _
  $region3: #{mdnrnn_rollout.1} parent=0 // pred_check_branch
    %15 = sbr.rel (0) target = $region5
  $region4: #{mdnrnn_rollout.1} parent=0 // pred_region
    _
  $region5: #{mdnrnn_rollout.1} parent=0 // pred_fallthru
    _
  // Predicated region
  $region6: #{mdnrnn_rollout.1} parent=0 // pred_check
    _
  $region7: #{mdnrnn_rollout.1} parent=0 // pred_check_branch
    %17 = sbr.rel (0) target = $region9
  $region8: #{mdnrnn_rollout.1} parent=0 // pred_region
    _
  $region9: #{mdnrnn_rollout.1} parent=0 // pred_fallthru
    _
  // Predicated region
  $region10: #{mdnrnn_rollout.1} parent=0 // pred_check
    _
  $region11: #{mdnrnn_rollout.1} parent=0 // pred_check_branch
    %19 = sbr.rel (0) target = $region13
  $region12: #{mdnrnn_rollout.1} parent=0 // pred_region
    _
  $region13: #{mdnrnn_rollout.1} parent=0 // pred_fallthru
    _
  // Predicated region
  $region14: #{mdnrnn_rollout.1} parent=0 // pred_check
    _
  $region15: #{mdnrnn_rollout.1} parent=0 // pred_check_branch
    %21 = sbr.rel (0) target = $region17
  $region16: #{mdnrnn_rollout.1} parent=0 // pred_region
    _
  $region17: #{mdnrnn_rollout.1} parent=0 // pred_fallthru
    _
  // Predicated region
  $region18: #{mdnrnn_rollout.1} parent=0 // pred_check
    _
  $region19: #{mdnrnn_rollout.1} parent=0 // pred_check_branch
    %23 = sbr.rel (0) target = $region21
  $region20: #{mdnrnn_rollout.1} parent=0 // pred_region
    _
  $region21: #{mdnrnn_rollout.1} parent=0 // pred_fallthru
    _
  // Predicated region
  $region22: #{mdnrnn_rollout.1} parent=0 // pred_check
    _
  $region23: #{mdnrnn_rollout.1} parent=0 // pred_check_branch
    %25 = sbr.rel (0) target = $region25
  $region24: #{mdnrnn_rollout.1} parent=0 // pred_region
    _
  $region25: #{mdnrnn_rollout.1} parent=0 // pred_fallthru
    _
  %p26 = scmp.eq.s32.totalorder 0, 0
  // Predicated region
  $region26: #{mdnrnn_rollout.1} parent=0 // pred_check
    %p27 = pneg %p26
  $region27: #{mdnrnn_rollout.1} parent=0 // pred_check_branch
    %29 = sbr.rel (%p27) target = $region29
  $region28: #{mdnrnn_rollout.1} parent=0 // pred_region
    %v30 = vld [vmem:[%s4] sm:$0xff]
    %vm31 = vcmask 261120
    %32 = vst.msk [vmem:[#allocation2] sm:$0xff] %vm31, %v30
    %v33 = vld [vmem:[%s5] sm:$0xff]
    %34 = vst.msk [vmem:[#allocation3] sm:$0xff] %vm31, %v33
  $region29: #{mdnrnn_rollout.1} parent=0 // pred_fallthru
    _
  %v35 = vld [vmem:[#allocation2] sm:$0xff]
  %v36 = vld [vmem:[#allocation3] sm:$0xff]
  %v37 = vld [vmem:[%s1] sm:$0xff]
  %v38 = vld [vmem:[%s1 + $0x8] sm:$0xff]
  %v39 = vld [vmem:[%s1 + $0x10] sm:$0xff]
  %v40 = vld [vmem:[%s1 + $0x18] sm:$0xff]
  %v41 = vld [vmem:[%s2] sm:$0xff]
  %v42 = vld [vmem:[%s2 + $0x8] sm:$0xff]
  %v43 = vld [vmem:[%s2 + $0x10] sm:$0xff]
  %v44 = vld [vmem:[%s2 + $0x18] sm:$0xff]
  %v45 = vld [vmem:[%s3] sm:$0x1]
  %v46 = vlaneseq
  %v47 = vand.u32 %v46, 127
  %vm48 = vcmp.ge.s32.totalorder %v47, 40
  %vm49 = vcmp.lt.s32.totalorder %v47, 80
  %vm50 = vmand %vm48, %vm49
  %vm51 = vcmp.ge.s32.totalorder %v47, 80
  %vm52 = vcmp.lt.s32.totalorder %v47, 85
  %vm53 = vmand %vm51, %vm52
  %v54 = vsel %vm53, 0.0, -1e+30
  %v55 = vld [vmem:[%s0] sm:$0xff]
  %vm56 = vcmask 261120
  %v58 = vsel %vm56, %v35, 0
  %60 = vmatprep.subr.mxu0 0.0
  %61 = vmatpush1.msra.mxu0 0.0
  %62 = vmatprep.subr.mxu0 0.0
  %63 = vmatpush1.msra.mxu0 0.0
  %64 = vmatprep.subr.mxu0 0.0
  %65 = vmatpush1.msra.mxu0 0.0
  %66 = vmatprep.subr.mxu0 0.0
  %67 = vmatpush1.msra.mxu0 0.0
  %68 = vmatprep.subr.mxu0 0.0
  %69 = vmatpush1.msra.mxu0 0.0
  %70 = vmatprep.subr.mxu0 0.0
  %71 = vmatpush1.msra.mxu0 0.0
  %72 = vmatprep.subr.mxu0 0.0
  %73 = vmatpush1.msra.mxu0 0.0
  %74 = vmatprep.subr.mxu0 0.0
  %75 = vmatpush1.msra.mxu0 0.0
  %76 = vmatprep.subr.mxu0 0.0
  %77 = vmatpush1.msra.mxu0 0.0
  %78 = vmatprep.subr.mxu0 0.0
  %79 = vmatpush1.msra.mxu0 0.0
  %80 = vmatprep.subr.mxu0 0.0
  %81 = vmatpush1.msra.mxu0 0.0
  %82 = vmatprep.subr.mxu0 0.0
  %83 = vmatpush1.msra.mxu0 0.0
  %84 = vmatprep.subr.mxu0 0.0
  %85 = vmatpush1.msra.mxu0 %v40
  %86 = vmatprep.subr.mxu0 0.0
  %87 = vmatpush1.msra.mxu0 %v39
  %88 = vmatprep.subr.mxu0 0.0
  %89 = vmatpush1.msra.mxu0 %v38
  %90 = vmatprep.subr.mxu0 0.0
  %91 = vmatpush1.msra.mxu0 %v37
  %92 = vmatprep.subr.mxu0 0.0
  %93 = vmatpush2.msra.mxu0 0.0
  %94 = vmatprep.subr.mxu0 0.0
  %95 = vmatpush2.msra.mxu0 0.0
  %96 = vmatprep.subr.mxu0 0.0
  %97 = vmatpush2.msra.mxu0 0.0
  %98 = vmatprep.subr.mxu0 0.0
  %99 = vmatpush2.msra.mxu0 0.0
  %100 = vmatprep.subr.mxu0 0.0
  %101 = vmatpush2.msra.mxu0 0.0
  %102 = vmatprep.subr.mxu0 0.0
  %103 = vmatpush2.msra.mxu0 0.0
  %104 = vmatprep.subr.mxu0 0.0
  %105 = vmatpush2.msra.mxu0 0.0
  %106 = vmatprep.subr.mxu0 0.0
  %107 = vmatpush2.msra.mxu0 0.0
  %108 = vmatprep.subr.mxu0 0.0
  %109 = vmatpush2.msra.mxu0 0.0
  %110 = vmatprep.subr.mxu0 0.0
  %111 = vmatpush2.msra.mxu0 0.0
  %112 = vmatprep.subr.mxu0 0.0
  %113 = vmatpush2.msra.mxu0 0.0
  %114 = vmatprep.subr.mxu0 0.0
  %115 = vmatpush2.msra.mxu0 0.0
  %116 = vmatprep.subr.mxu0 0.0
  %117 = vmatpush2.msra.mxu0 0.0
  %118 = vmatprep.subr.mxu0 0.0
  %119 = vmatpush2.msra.mxu0 0.0
  %120 = vmatprep.subr.mxu0 0.0
  %121 = vmatpush2.msra.mxu0 0.0
  %122 = vmatprep.subr.mxu0 0.0
  %123 = vmatpush2.msra.mxu0 0.0
  %124 = vmatprep.mubr.f32.mxu0 0.0
  %125 = vmatmul.mubr.f32.gmra.mxu0 %v58
  %v126 = vpop.f32.mrf.mxu0
  %v127 = vadd.f32 0.0, %v126
  %v128 = vpop.f32.mrf.mxu0
  %129 = vdwg.mxu0
  %v130 = vadd.f32 %v55, %v127
  %v131 = vxor.u32 %v130, 2147483648
  %v132 = vmul.f32 %v131, 1.442695
  %v133 = vpow.pop %v132
  %v134 = vadd.f32 %v133, 1.0
  %v135 = vrcp.pop %v134
  %v136 = vmul.f32 1.0, %v135
  %v137 = vtanh.pop %v130
  %139 = vrot.lane.b32.xlu0 %v36, 32
  %v140 = vpop.permute.xlu0 %139
  %v142 = vmul.f32 %v136, %v140
  %144 = vrot.lane.b32.xlu0 %v137, 64
  %v145 = vpop.permute.xlu0 %144
  %v147 = vmul.f32 %v136, %v145
  %149 = vrot.lane.b32.xlu0 %v147, 32
  %v150 = vpop.permute.xlu0 %149
  %v152 = vadd.f32 %v142, %v150
  %v153 = vtanh.pop %v152
  %155 = vrot.lane.b32.xlu0 %v153, 64
  %v156 = vpop.permute.xlu0 %155
  %v158 = vmul.f32 %v136, %v156
  %v160 = vlaneseq
  %v161 = vshrl.u32 %v160, 7
  %v162 = vsub.s32 0, %v161
  %v163 = vrot.slane %v45, %v162
  %166 = vrot.lane.b32.xlu0 %v158, 32
  %v167 = vpop.permute.xlu0 %166
  %v168 = vsel %vm56, %v167, 0
  %170 = vmatprep.subr.mxu0 0.0
  %171 = vmatpush1.msra.mxu0 0.0
  %172 = vmatprep.subr.mxu0 0.0
  %173 = vmatpush1.msra.mxu0 0.0
  %174 = vmatprep.subr.mxu0 0.0
  %175 = vmatpush1.msra.mxu0 0.0
  %176 = vmatprep.subr.mxu0 0.0
  %177 = vmatpush1.msra.mxu0 0.0
  %178 = vmatprep.subr.mxu0 0.0
  %179 = vmatpush1.msra.mxu0 0.0
  %180 = vmatprep.subr.mxu0 0.0
  %181 = vmatpush1.msra.mxu0 0.0
  %182 = vmatprep.subr.mxu0 0.0
  %183 = vmatpush1.msra.mxu0 0.0
  %184 = vmatprep.subr.mxu0 0.0
  %185 = vmatpush1.msra.mxu0 0.0
  %186 = vmatprep.subr.mxu0 0.0
  %187 = vmatpush1.msra.mxu0 0.0
  %188 = vmatprep.subr.mxu0 0.0
  %189 = vmatpush1.msra.mxu0 0.0
  %190 = vmatprep.subr.mxu0 0.0
  %191 = vmatpush1.msra.mxu0 0.0
  %192 = vmatprep.subr.mxu0 0.0
  %193 = vmatpush1.msra.mxu0 0.0
  %194 = vmatprep.subr.mxu0 0.0
  %195 = vmatpush1.msra.mxu0 %v44
  %196 = vmatprep.subr.mxu0 0.0
  %197 = vmatpush1.msra.mxu0 %v43
  %198 = vmatprep.subr.mxu0 0.0
  %199 = vmatpush1.msra.mxu0 %v42
  %200 = vmatprep.subr.mxu0 0.0
  %201 = vmatpush1.msra.mxu0 %v41
  %202 = vmatprep.subr.mxu0 0.0
  %203 = vmatpush2.msra.mxu0 0.0
  %204 = vmatprep.subr.mxu0 0.0
  %205 = vmatpush2.msra.mxu0 0.0
  %206 = vmatprep.subr.mxu0 0.0
  %207 = vmatpush2.msra.mxu0 0.0
  %208 = vmatprep.subr.mxu0 0.0
  %209 = vmatpush2.msra.mxu0 0.0
  %210 = vmatprep.subr.mxu0 0.0
  %211 = vmatpush2.msra.mxu0 0.0
  %212 = vmatprep.subr.mxu0 0.0
  %213 = vmatpush2.msra.mxu0 0.0
  %214 = vmatprep.subr.mxu0 0.0
  %215 = vmatpush2.msra.mxu0 0.0
  %216 = vmatprep.subr.mxu0 0.0
  %217 = vmatpush2.msra.mxu0 0.0
  %218 = vmatprep.subr.mxu0 0.0
  %219 = vmatpush2.msra.mxu0 0.0
  %220 = vmatprep.subr.mxu0 0.0
  %221 = vmatpush2.msra.mxu0 0.0
  %222 = vmatprep.subr.mxu0 0.0
  %223 = vmatpush2.msra.mxu0 0.0
  %224 = vmatprep.subr.mxu0 0.0
  %225 = vmatpush2.msra.mxu0 0.0
  %226 = vmatprep.subr.mxu0 0.0
  %227 = vmatpush2.msra.mxu0 0.0
  %228 = vmatprep.subr.mxu0 0.0
  %229 = vmatpush2.msra.mxu0 0.0
  %230 = vmatprep.subr.mxu0 0.0
  %231 = vmatpush2.msra.mxu0 0.0
  %232 = vmatprep.subr.mxu0 0.0
  %233 = vmatpush2.msra.mxu0 0.0
  %234 = vmatprep.mubr.f32.mxu0 0.0
  %235 = vmatmul.mubr.f32.gmra.mxu0 %v168
  %v236 = vpop.f32.mrf.mxu0
  %v237 = vadd.f32 %v163, %v236
  %v238 = vpop.f32.mrf.mxu0
  %239 = vdwg.mxu0
  %v240 = vadd.f32 %v237, %v54
  %241 = vmax.xlane.f32.xlu0 %v240
  %v242 = vpop.xlane.xlu0 %241
  %v243 = vsub.f32 %v240, %v242
  %v244 = vmul.f32 %v243, 1.442695
  %v245 = vpow.pop %v244
  %246 = vadd.xlane.f32.xlu0 %v245
  %v247 = vpop.xlane.xlu0 %246
  %v248 = vlog2.pop %v247
  %v249 = vmul.f32 %v248, 0.6931472
  %v250 = vadd.f32 %v242, %v249
  %v251 = vmul.f32 %v237, 1.442695
  %v252 = vpow.pop %v251
  %v253 = vsel %vm50, %v252, %v237
  %v254 = vsub.f32 %v237, %v250
  %v255 = vsel %vm53, %v254, %v253
  %256 = vst [vmem:[%s8] sm:$0xff] %v255
  %258 = vst.msk [vmem:[#allocation2] sm:$0xff] %vm56, %v167
  %260 = vrot.lane.b32.xlu0 %v152, 96
  %v261 = vpop.permute.xlu0 %260
  %263 = vst.msk [vmem:[#allocation3] sm:$0xff] %vm56, %v261
  %264 = vst.msk [vmem:[%s6] sm:$0xff] %vm56, %v167
  %265 = vst.msk [vmem:[%s7] sm:$0xff] %vm56, %v261
  // Predicated region
  $region30: #{mdnrnn_rollout.1} parent=0 // pred_check
    _
  $region31: #{mdnrnn_rollout.1} parent=0 // pred_check_branch
    %267 = sbr.rel (0) target = $region33
  $region32: #{mdnrnn_rollout.1} parent=0 // pred_region
    _
  $region33: #{mdnrnn_rollout.1} parent=0 // pred_fallthru
    _
  // Predicated region
  $region34: #{mdnrnn_rollout.1} parent=0 // pred_check
    _
  $region35: #{mdnrnn_rollout.1} parent=0 // pred_check_branch
    %269 = sbr.rel (0) target = $region37
  $region36: #{mdnrnn_rollout.1} parent=0 // pred_region
    _
  $region37: #{mdnrnn_rollout.1} parent=0 // pred_fallthru
    _
  // Predicated region
  $region38: #{mdnrnn_rollout.1} parent=0 // pred_check
    _
  $region39: #{mdnrnn_rollout.1} parent=0 // pred_check_branch
    %271 = sbr.rel (0) target = $region41
  $region40: #{mdnrnn_rollout.1} parent=0 // pred_region
    _
  $region41: #{mdnrnn_rollout.1} parent=0 // pred_fallthru
    _
  // Predicated region
  $region42: #{mdnrnn_rollout.1} parent=0 // pred_check
    _
  $region43: #{mdnrnn_rollout.1} parent=0 // pred_check_branch
    %273 = sbr.rel (0) target = $region45
  $region44: #{mdnrnn_rollout.1} parent=0 // pred_region
    _
  $region45: #{mdnrnn_rollout.1} parent=0 // pred_fallthru
    _
  // Predicated region
  $region46: #{mdnrnn_rollout.1} parent=0 // pred_check
    _
  $region47: #{mdnrnn_rollout.1} parent=0 // pred_check_branch
    %275 = sbr.rel (0) target = $region49
  $region48: #{mdnrnn_rollout.1} parent=0 // pred_region
    _
  $region49: #{mdnrnn_rollout.1} parent=0 // pred_fallthru
    _
  // Predicated region
  $region50: #{mdnrnn_rollout.1} parent=0 // pred_check
    _
  $region51: #{mdnrnn_rollout.1} parent=0 // pred_check_branch
    %277 = sbr.rel (0) target = $region53
  $region52: #{mdnrnn_rollout.1} parent=0 // pred_region
    _
  $region53: #{mdnrnn_rollout.1} parent=0 // pred_fallthru
    _

</llo_original>
